<compile_context>
chip_gen: v7x
topology: tpu7x:2x2x1
jax: 0.10.0
libtpu: 0.0.40
codegen_flags: <defaults>
</compile_context>

<pallas_src>
import numpy as np
import jax
import jax.numpy as jnp
from jax.experimental import pallas as pl
from jax.experimental.pallas import tpu as pltpu

COS_MARGIN = 0.35
ARC_MARGIN = 0.50
SCALE = 30.0
EPS = 1e-12

# precomputed constants for the angle-addition identity (avoids acos/cos)
_COS_M = float(np.cos(ARC_MARGIN))
_SIN_M = float(np.sin(ARC_MARGIN))

# class-dim padding fill: exp(SCALE * NEG_FILL) underflows to 0 for any float dtype
_NEG_FILL = -1.0e4

_LANES = 128


def _round_up(x, m):
    return (x + m - 1) // m * m


def cos_arc_loss_kernel(preds_ref, labels_ref, out_ref, tgt_acc, exp_acc):
    j = pl.program_id(1)                         # class-tile index (reduction axis)
    bn, bc = preds_ref.shape

    @pl.when(j == 0)
    def _init():
        tgt_acc[...] = jnp.zeros_like(tgt_acc)
        exp_acc[...] = jnp.zeros_like(exp_acc)

    labels = labels_ref[...]                     # (bn, 1) int32 (padded rows hold -1)
    # hoisted lane iota, reused for every chunk (only the label shift changes)
    lane = jax.lax.broadcasted_iota(jnp.int32, (bn, _LANES), 1)
    lab_local = labels - j * bc                  # (bn, 1) target lane within this tile

    # Walk the class tile in 128-lane chunks sliced straight off the VMEM ref:
    # bounds vreg live ranges (no full-tile materialization / spills); the
    # (bn, 128) VMEM scratch accumulators absorb the partial sums with cheap
    # VPU adds.  The single cross-lane XLU reduce happens once per batch tile.
    for off in range(0, bc, _LANES):
        chunk = preds_ref[:, off:off + _LANES].astype(jnp.float32)   # (bn, 128)
        exp_acc[...] += jnp.exp(SCALE * chunk)                       # EUP + VPU add
        is_target = lane == (lab_local - off)                        # (bn, 128) bool
        tgt_acc[...] += jnp.where(is_target, chunk, 0.0)             # <=1 nonzero / row

    @pl.when(j == pl.num_programs(1) - 1)
    def _finalize():
        target = jnp.sum(tgt_acc[...], axis=1, keepdims=True)    # (bn, 1) raw target cos
        row_sum = jnp.sum(exp_acc[...], axis=1, keepdims=True)   # (bn, 1) sum_c exp(s*pred)

        target_c = jnp.clip(target, -1.0 + EPS, 1.0 - EPS)
        # cos(theta + m) via angle addition; sin(theta) >= 0 since theta in [0, pi],
        # and torch's theta-clamp to [eps, pi-eps] is a no-op after the cos clamp.
        sin_t = jnp.sqrt(jnp.maximum(1.0 - target_c * target_c, 0.0))
        cos_tm = target_c * _COS_M - sin_t * _SIN_M
        numerator = SCALE * (cos_tm - COS_MARGIN)                 # (bn, 1)

        # non-target sum = full row sum minus the UNCLIPPED target term (clamped >= 0)
        others = jnp.maximum(row_sum - jnp.exp(SCALE * target), 0.0)
        denominator = jnp.exp(numerator) + others
        per_sample = numerator - jnp.log(denominator)             # (bn, 1)

        # lane-dense unmasked store; wrapper reads column 0
        out_ref[...] = jnp.broadcast_to(per_sample, (bn, _LANES)).astype(out_ref.dtype)


def cos_arc_loss(preds, labels, *, block_n=256, block_c=2048):
    """preds: (N, C) float cosine logits (any float dtype); labels: (N,) int -> scalar loss."""
    n, c = preds.shape
    bn = min(block_n, _round_up(n, 8))           # batch tile (sublanes)
    bc = min(block_c, _round_up(c, _LANES))      # class tile (lanes)
    n_pad = _round_up(n, bn)
    c_pad = _round_up(c, bc)

    preds_p = preds
    if (n_pad, c_pad) != (n, c):
        preds_p = jnp.pad(preds, ((0, n_pad - n), (0, c_pad - c)),
                          constant_values=_NEG_FILL)
    labels_p = labels.astype(jnp.int32).reshape(n, 1)
    if n_pad != n:
        labels_p = jnp.pad(labels_p, ((0, n_pad - n), (0, 0)), constant_values=-1)

    grid = (n_pad // bn, c_pad // bc)
    itemsize = jnp.dtype(preds.dtype).itemsize

    per_sample = pl.pallas_call(
        cos_arc_loss_kernel,
        out_shape=jax.ShapeDtypeStruct((n_pad, _LANES), jnp.float32),
        grid_spec=pltpu.PrefetchScalarGridSpec(
            num_scalar_prefetch=0,
            grid=grid,
            in_specs=[
                pl.BlockSpec((bn, bc), lambda i, j: (i, j)),   # preds tile
                pl.BlockSpec((bn, 1), lambda i, j: (i, 0)),    # labels column
            ],
            out_specs=pl.BlockSpec((bn, _LANES), lambda i, j: (i, 0)),
            scratch_shapes=[
                pltpu.VMEM((bn, _LANES), jnp.float32),         # target accumulator
                pltpu.VMEM((bn, _LANES), jnp.float32),         # exp-sum accumulator
            ],
        ),
        compiler_params=pltpu.CompilerParams(
            dimension_semantics=("parallel", "arbitrary"),
            vmem_limit_bytes=32 * 1024 * 1024,   # sized for v7x's smaller VMEM; plenty here
        ),
        cost_estimate=pl.CostEstimate(
            flops=int(6 * n_pad * c_pad),
            transcendentals=int(n_pad * c_pad),
            bytes_accessed=int(n_pad * c_pad * itemsize + n_pad * 4 + n_pad * _LANES * 4),
        ),
    )(preds_p, labels_p)

    # tiny finish in plain XLA: slice off padded rows, mean, negate
    return -(jnp.sum(per_sample[:n, 0]) / n)


if __name__ == "__main__":
    key = jax.random.PRNGKey(0)
    k1, k2 = jax.random.split(key)
    N, C = 8, 32  # batch, num classes

    # logits are cosine similarities in [-1, 1]
    preds = jax.random.uniform(k1, (N, C), jnp.float32, minval=-1.0, maxval=1.0)
    labels = jax.random.randint(k2, (N,), 0, C, dtype=jnp.int32)

    loss = cos_arc_loss(preds, labels)
    jax.block_until_ready(loss)

    # reference (float64 numpy, mirrors the torch forward exactly)
    p = np.asarray(preds, dtype=np.float64)
    y = np.asarray(labels)
    tgt = p[np.arange(N), y]
    theta = np.arccos(np.clip(tgt, -1.0 + EPS, 1.0 - EPS))
    theta = np.clip(theta, EPS, 4.0 * np.arctan(1.0) - EPS)
    numer = SCALE * (np.cos(theta + ARC_MARGIN) - COS_MARGIN)
    mask = np.ones((N, C), dtype=bool)
    mask[np.arange(N), y] = False
    others_sum = np.exp(SCALE * p)[mask].reshape(N, C - 1).sum(axis=1)
    ref = -np.mean(numer - np.log(np.exp(numer) + others_sum))

    np.testing.assert_allclose(float(loss), ref, rtol=1e-4, atol=1e-3)
    print("KERNEL_OK")
</pallas_src>

<mosaic_0001>
module attributes {stable_mosaic.version = 11 : i64} {
  func.func @cos_arc_loss_kernel(%arg0: i32, %arg1: i32, %arg2: memref<8x128xf32, #tpu.memory_space<vmem>>, %arg3: memref<8x1xi32, #tpu.memory_space<vmem>>, %arg4: memref<8x128xf32, #tpu.memory_space<vmem>>, %arg5: memref<8x128xf32, #tpu.memory_space<vmem>>, %arg6: memref<8x128xf32, #tpu.memory_space<vmem>>) attributes {dimension_semantics = [#tpu.dimension_semantics<parallel>, #tpu.dimension_semantics<arbitrary>], iteration_bounds = array<i64: 1, 1>, scalar_prefetch = 0 : i64, scratch_operands = 2 : i64, tpu.core_type = #tpu.core_type<tc>, window_params = [{transform_indices = @transform_0, window_bounds = array<i64: 8, 128>}, {transform_indices = @transform_1, window_bounds = array<i64: 8, 1>}, {transform_indices = @transform_2, window_bounds = array<i64: 8, 128>}]} {
    %c0_i32 = arith.constant 0 : i32
    %0 = arith.cmpi eq, %arg1, %c0_i32 : i32
    %1 = arith.extui %0 : i1 to i32
    %c0_i32_0 = arith.constant 0 : i32
    %2 = arith.cmpi ne, %1, %c0_i32_0 : i32
    scf.if %2 {
      %cst_16 = arith.constant 0.000000e+00 : f32
      %27 = vector.broadcast %cst_16 : f32 to vector<8x128xf32>
      %c0_17 = arith.constant 0 : index
      %c0_18 = arith.constant 0 : index
      %28 = vector.load %arg5[%c0_17, %c0_18] : memref<8x128xf32, #tpu.memory_space<vmem>>, vector<8x128xf32>
      tpu.vector_store %arg5[%c0_17, %c0_18], %27 {strides = array<i32>} : memref<8x128xf32, #tpu.memory_space<vmem>>, vector<8x128xf32>,
      %cst_19 = arith.constant 0.000000e+00 : f32
      %29 = vector.broadcast %cst_19 : f32 to vector<8x128xf32>
      %c0_20 = arith.constant 0 : index
      %c0_21 = arith.constant 0 : index
      %30 = vector.load %arg6[%c0_20, %c0_21] : memref<8x128xf32, #tpu.memory_space<vmem>>, vector<8x128xf32>
      tpu.vector_store %arg6[%c0_20, %c0_21], %29 {strides = array<i32>} : memref<8x128xf32, #tpu.memory_space<vmem>>, vector<8x128xf32>,
    } else {
    }
    %c0 = arith.constant 0 : index
    %c0_1 = arith.constant 0 : index
    %3 = vector.load %arg3[%c0, %c0_1] : memref<8x1xi32, #tpu.memory_space<vmem>>, vector<8x1xi32>
    %4 = tpu.iota {dimensions = array<i32: 1>} : vector<8x128xi32>
    %c128_i32 = arith.constant 128 : i32
    %5 = arith.muli %arg1, %c128_i32 : i32
    %6 = vector.broadcast %5 : i32 to vector<8x1xi32>
    %7 = arith.subi %3, %6 : vector<8x1xi32>
    %c0_2 = arith.constant 0 : index
    %c0_3 = arith.constant 0 : index
    %8 = vector.load %arg2[%c0_2, %c0_3] : memref<8x128xf32, #tpu.memory_space<vmem>>, vector<8x128xf32>
    %c0_4 = arith.constant 0 : index
    %c0_5 = arith.constant 0 : index
    %9 = vector.load %arg6[%c0_4, %c0_5] : memref<8x128xf32, #tpu.memory_space<vmem>>, vector<8x128xf32>
    %cst = arith.constant 3.000000e+01 : f32
    %10 = vector.broadcast %cst : f32 to vector<8x128xf32>
    %11 = arith.mulf %10, %8 : vector<8x128xf32>
    %12 = math.exp %11 : vector<8x128xf32>
    %13 = arith.addf %9, %12 : vector<8x128xf32>
    %c0_6 = arith.constant 0 : index
    %c0_7 = arith.constant 0 : index
    %14 = vector.load %arg6[%c0_6, %c0_7] : memref<8x128xf32, #tpu.memory_space<vmem>>, vector<8x128xf32>
    tpu.vector_store %arg6[%c0_6, %c0_7], %13 {strides = array<i32>} : memref<8x128xf32, #tpu.memory_space<vmem>>, vector<8x128xf32>,
    %c0_i32_8 = arith.constant 0 : i32
    %15 = vector.broadcast %c0_i32_8 : i32 to vector<8x1xi32>
    %16 = arith.subi %7, %15 : vector<8x1xi32>
    %17 = vector.broadcast %16 : vector<8x1xi32> to vector<8x128xi32>
    %18 = arith.cmpi eq, %4, %17 : vector<8x128xi32>
    %c0_9 = arith.constant 0 : index
    %c0_10 = arith.constant 0 : index
    %19 = vector.load %arg5[%c0_9, %c0_10] : memref<8x128xf32, #tpu.memory_space<vmem>>, vector<8x128xf32>
    %cst_11 = arith.constant 0.000000e+00 : f32
    %20 = vector.broadcast %cst_11 : f32 to vector<8x128xf32>
    %21 = arith.select %18, %8, %20 : vector<8x128xi1>, vector<8x128xf32>
    %22 = arith.addf %19, %21 : vector<8x128xf32>
    %c0_12 = arith.constant 0 : index
    %c0_13 = arith.constant 0 : index
    %23 = vector.load %arg5[%c0_12, %c0_13] : memref<8x128xf32, #tpu.memory_space<vmem>>, vector<8x128xf32>
    tpu.vector_store %arg5[%c0_12, %c0_13], %22 {strides = array<i32>} : memref<8x128xf32, #tpu.memory_space<vmem>>, vector<8x128xf32>,
    %c0_i32_14 = arith.constant 0 : i32
    %24 = arith.cmpi eq, %arg1, %c0_i32_14 : i32
    %25 = arith.extui %24 : i1 to i32
    %c0_i32_15 = arith.constant 0 : i32
    %26 = arith.cmpi ne, %25, %c0_i32_15 : i32
    scf.if %26 {
      %c0_16 = arith.constant 0 : index
      %c0_17 = arith.constant 0 : index
      %27 = vector.load %arg5[%c0_16, %c0_17] : memref<8x128xf32, #tpu.memory_space<vmem>>, vector<8x128xf32>
      %cst_18 = arith.constant dense<0.000000e+00> : vector<8xf32>
      %28 = vector.multi_reduction <add>, %27, %cst_18 [1] : vector<8x128xf32> to vector<8xf32>
      %29 = vector.shape_cast %28 : vector<8xf32> to vector<8x1xf32>
      %c0_19 = arith.constant 0 : index
      %c0_20 = arith.constant 0 : index
      %30 = vector.load %arg6[%c0_19, %c0_20] : memref<8x128xf32, #tpu.memory_space<vmem>>, vector<8x128xf32>
      %cst_21 = arith.constant dense<0.000000e+00> : vector<8xf32>
      %31 = vector.multi_reduction <add>, %30, %cst_21 [1] : vector<8x128xf32> to vector<8xf32>
      %32 = vector.shape_cast %31 : vector<8xf32> to vector<8x1xf32>
      %cst_22 = arith.constant -1.000000e+00 : f32
      %cst_23 = arith.constant 1.000000e+00 : f32
      %33 = vector.broadcast %cst_22 : f32 to vector<8x1xf32>
      %34 = arith.maximumf %33, %29 : vector<8x1xf32>
      %35 = vector.broadcast %cst_23 : f32 to vector<8x1xf32>
      %36 = arith.minimumf %35, %34 : vector<8x1xf32>
      %37 = arith.mulf %36, %36 : vector<8x1xf32>
      %cst_24 = arith.constant 1.000000e+00 : f32
      %38 = vector.broadcast %cst_24 : f32 to vector<8x1xf32>
      %39 = arith.subf %38, %37 : vector<8x1xf32>
      %cst_25 = arith.constant 0.000000e+00 : f32
      %40 = vector.broadcast %cst_25 : f32 to vector<8x1xf32>
      %41 = arith.maximumf %39, %40 : vector<8x1xf32>
      %42 = math.sqrt %41 : vector<8x1xf32>
      %cst_26 = arith.constant 0.87758255 : f32
      %43 = vector.broadcast %cst_26 : f32 to vector<8x1xf32>
      %44 = arith.mulf %36, %43 : vector<8x1xf32>
      %cst_27 = arith.constant 0.47942555 : f32
      %45 = vector.broadcast %cst_27 : f32 to vector<8x1xf32>
      %46 = arith.mulf %42, %45 : vector<8x1xf32>
      %47 = arith.subf %44, %46 : vector<8x1xf32>
      %cst_28 = arith.constant 3.500000e-01 : f32
      %48 = vector.broadcast %cst_28 : f32 to vector<8x1xf32>
      %49 = arith.subf %47, %48 : vector<8x1xf32>
      %cst_29 = arith.constant 3.000000e+01 : f32
      %50 = vector.broadcast %cst_29 : f32 to vector<8x1xf32>
      %51 = arith.mulf %50, %49 : vector<8x1xf32>
      %cst_30 = arith.constant 3.000000e+01 : f32
      %52 = vector.broadcast %cst_30 : f32 to vector<8x1xf32>
      %53 = arith.mulf %52, %29 : vector<8x1xf32>
      %54 = math.exp %53 : vector<8x1xf32>
      %55 = arith.subf %32, %54 : vector<8x1xf32>
      %cst_31 = arith.constant 0.000000e+00 : f32
      %56 = vector.broadcast %cst_31 : f32 to vector<8x1xf32>
      %57 = arith.maximumf %55, %56 : vector<8x1xf32>
      %58 = math.exp %51 : vector<8x1xf32>
      %59 = arith.addf %58, %57 : vector<8x1xf32>
      %60 = math.log %59 : vector<8x1xf32>
      %61 = arith.subf %51, %60 : vector<8x1xf32>
      %62 = vector.shape_cast %61 : vector<8x1xf32> to vector<8x1xf32>
      %63 = vector.broadcast %62 : vector<8x1xf32> to vector<8x128xf32>
      %c0_32 = arith.constant 0 : index
      %c0_33 = arith.constant 0 : index
      %64 = vector.load %arg4[%c0_32, %c0_33] : memref<8x128xf32, #tpu.memory_space<vmem>>, vector<8x128xf32>
      tpu.vector_store %arg4[%c0_32, %c0_33], %63 {strides = array<i32>} : memref<8x128xf32, #tpu.memory_space<vmem>>, vector<8x128xf32>,
    } else {
    }
    return
  }
  func.func @transform_0(%arg0: i32, %arg1: i32) -> (i32, i32) {
    %c0_i32 = arith.constant 0 : i32
    return %arg0, %arg1 : i32, i32
  }
  func.func @transform_1(%arg0: i32, %arg1: i32) -> (i32, i32) {
    %c0_i32 = arith.constant 0 : i32
    %c0_i32_0 = arith.constant 0 : i32
    return %arg0, %c0_i32 : i32, i32
  }
  func.func @transform_2(%arg0: i32, %arg1: i32) -> (i32, i32) {
    %c0_i32 = arith.constant 0 : i32
    %c0_i32_0 = arith.constant 0 : i32
    return %arg0, %c0_i32 : i32, i32
  }
}

</mosaic_0001>

<llo_original>
// kernel: tpu_custom_call.1
$region0: #{tpu_custom_call.1}
  #allocation0 [shape = 'u32[]', space=smem, size = 0x4, offset = 0x4, fixed_abs, tag = 'smem constant byte address 0x4 - core index']
  #allocation1 [shape = 'u32[144,128]{1,0:T(1,128)}', space=vmem, size = 0x12000, scoped, tag = 'internal scratch']
  #allocation2 [shape = 'f32[8,128]{1,0:T(8,128)}', space=vmem, size = 0x1000, scoped, tag = 'scratch operand']
  #allocation3 [shape = 'f32[8,128]{1,0:T(8,128)}', space=vmem, size = 0x1000, scoped, tag = 'scratch operand']
  %s0 = inlined_call_operand.vmem [shape: f32[8,128], index: 0, kind: input, shape index: {}]
  %s1 = inlined_call_operand.vmem [shape: s32[8,1], index: 1, kind: input, shape index: {}]
  %s2 = inlined_call_operand.hbm [shape: f32[8,128], index: 2, kind: output, shape index: {}]
  %s3 = sld [smem:[#allocation0]]
  $region26: #{tpu_custom_call.1} parent=0
    _
  %s5 = ssub.s32 1, %s3
  %s6 = scalar_select 0, %s5, %s3
  $region1: #{tpu_custom_call.1} parent=0
    #allocation4 [shape = 'u8[4096]{0}', space=vmem, size = 0x1000, scoped, tag = 'output window, operand 0, single buffered']
    #allocation5 [shape = 's32[1]{0}', space=sflag, size = 0x4, scoped, tag = 'scoped memory for tpu_custom_call.1']
    %7 = vsyncpa [#allocation5], 0
    // Predicated region
    $region2: #{tpu_custom_call.1} parent=1 // pred_check
      _
    $region3: #{tpu_custom_call.1} parent=1 // pred_check_branch
      %9 = sbr.rel (0) target = $region5
    $region4: #{tpu_custom_call.1} parent=1 // pred_region
      _
    $region5: #{tpu_custom_call.1} parent=1 // pred_fallthru
      _
    // Predicated region
    $region6: #{tpu_custom_call.1} parent=1 // pred_check
      _
    $region7: #{tpu_custom_call.1} parent=1 // pred_check_branch
      %11 = sbr.rel (0) target = $region9
    $region8: #{tpu_custom_call.1} parent=1 // pred_region
      _
    $region9: #{tpu_custom_call.1} parent=1 // pred_fallthru
      _
    %p12 = scmp.eq.s32.totalorder 0, 0
    // Predicated region
    $region10: #{tpu_custom_call.1} parent=1 // pred_check
      %p13 = pneg %p12
    $region11: #{tpu_custom_call.1} parent=1 // pred_check_branch
      %15 = sbr.rel (%p13) target = $region13
    $region12: #{tpu_custom_call.1} parent=1 // pred_region
      %16 = vst [vmem:[#allocation2] sm:$0xff] 0.0
      %17 = vst [vmem:[#allocation3] sm:$0xff] 0.0
    $region13: #{tpu_custom_call.1} parent=1 // pred_fallthru
      _
    %v18 = vld [vmem:[%s1] sm:$0xff]
    %v19 = vlaneseq
    %v20 = vand.u32 %v19, 127
    %s21 = smul.u32 0, 128
    %v22 = vstv %s21
    %v23 = vsub.s32 %v18, %v22
    %v24 = vld [vmem:[%s0] sm:$0xff]
    %v25 = vld [vmem:[#allocation3] sm:$0xff]
    %v26 = vmul.f32 %v24, 30.0
    %v27 = vmul.f32 %v26, 1.442695
    %v28 = vpow.pop %v27
    %v29 = vadd.f32 %v25, %v28
    %30 = vst [vmem:[#allocation3] sm:$0xff] %v29
    %31 = vset.pattern.permute.xlu0 0
    %32 = vperm.xlu0 %31, %v23
    %v33 = vpop.permute.xlu0 %32
    %vm34 = vcmp.eq.s32.totalorder %v20, %v33
    %v35 = vld [vmem:[#allocation2] sm:$0xff]
    %v36 = vsel %vm34, %v24, 0.0
    %v37 = vadd.f32 %v35, %v36
    %38 = vst [vmem:[#allocation2] sm:$0xff] %v37
    // Predicated region
    $region14: #{tpu_custom_call.1} parent=1 // pred_check
      %p39 = pneg %p12
    $region15: #{tpu_custom_call.1} parent=1 // pred_check_branch
      %41 = sbr.rel (%p39) target = $region17
    $region16: #{tpu_custom_call.1} parent=1 // pred_region
      %v42 = vld [vmem:[#allocation2] sm:$0xff]
      %43 = vadd.xlane.f32.xlu0 %v42
      %v44 = vpop.xlane.xlu0 %43
      %v45 = vld [vmem:[#allocation3] sm:$0xff]
      %46 = vadd.xlane.f32.xlu0 %v45
      %v47 = vpop.xlane.xlu0 %46
      %v48 = vmax.f32 %v44, -1.0
      %v49 = vmin.f32 %v48, 1.0
      %v50 = vmul.f32 %v49, %v49
      %v51 = vsub.f32 1.0, %v50
      %v52 = vmax.f32 %v51, 0.0
      %v53 = vrsqrt.pop %v52
      %v54 = vmul.f32 %v52, %v53
      %vm55 = vcmp.eq.f32.partialorder %v52, inf
      %v56 = vsel %vm55, %v52, %v54
      %vm57 = vcmp.eq.f32.partialorder %v52, 0.0
      %v58 = vand.u32 %v52, 2147483648
      %v59 = vsel %vm57, %v58, %v56
      %v60 = vmul.f32 %v49, 0.87758255
      %v61 = vmul.f32 %v59, 0.47942555
      %v62 = vsub.f32 %v60, %v61
      %v63 = vsub.f32 %v62, 0.35
      %v64 = vmul.f32 %v63, 30.0
      %v65 = vmul.f32 %v44, 30.0
      %v66 = vmul.f32 %v65, 1.442695
      %v67 = vpow.pop %v66
      %v68 = vsub.f32 %v47, %v67
      %v69 = vmax.f32 %v68, 0.0
      %v70 = vmul.f32 %v64, 1.442695
      %v71 = vpow.pop %v70
      %v72 = vadd.f32 %v71, %v69
      %v73 = vlog2.pop %v72
      %v74 = vmul.f32 %v73, 0.6931472
      %v75 = vsub.f32 %v64, %v74
      %76 = vst [vmem:[#allocation4] sm:$0xff] %v75
    $region17: #{tpu_custom_call.1} parent=1 // pred_fallthru
      _
    // Predicated region
    $region18: #{tpu_custom_call.1} parent=1 // pred_check
      _
    $region19: #{tpu_custom_call.1} parent=1 // pred_check_branch
      %78 = sbr.rel (0) target = $region21
    $region20: #{tpu_custom_call.1} parent=1 // pred_region
      %s80 = ssub.s32 128, 128
      %81 = vsyncadd [#allocation5], %s80
      %s83 = sshll.u32 [#allocation4], 4
      %s84 = int_to_ptr.vmem [resolvable:$true] %s83
      %86 = dma.vmem_to_hbm [thread:$0]  %s84, 128, %s2, [#allocation5]
    $region21: #{tpu_custom_call.1} parent=1 // pred_fallthru
      _
    // Predicated region
    $region22: #{tpu_custom_call.1} parent=1 // pred_check
      _
    $region23: #{tpu_custom_call.1} parent=1 // pred_check_branch
      %88 = sbr.rel (0) target = $region25
    $region24: #{tpu_custom_call.1} parent=1 // pred_region
      %89 = dma.done [#allocation5], 128
    $region25: #{tpu_custom_call.1} parent=1 // pred_fallthru
      _
    %90 = vsyncpa [#allocation5], 1

</llo_original>
